<compile_context>
chip_gen: v5e
topology: v5e:2x2
jax: 0.10.0
libtpu: 0.0.40
codegen_flags: <defaults>
</compile_context>

<pallas_src>
import itertools

import numpy as np
import jax
import jax.numpy as jnp
from jax.experimental import pallas as pl
from jax.experimental.pallas import tpu as pltpu


def _cdiv(a, b):
    return -(-a // b)


def _round_up(a, b):
    return _cdiv(a, b) * b


def _lane_tiling(HW, sublane_rows, min_tiles, budget_bytes=10 << 20, live=10):
    """Pick (tile, num_tiles, HW_pad): tile % 128 == 0, num_tiles * tile >= HW.

    `live` over-estimates the number of simultaneously-live (sublane_rows,
    tile) f32 temporaries plus double-buffered blocks, keeping the per-step
    VMEM footprint well under the scoped default on every TPU generation
    (16 MiB v5e, 32 MiB v6e/v7x scoped; 64 MiB physical on v7x).
    """
    hw128 = _round_up(HW, 128)
    t_cap = max(128, (budget_bytes // (live * 4 * max(1, sublane_rows))) // 128 * 128)
    k = _cdiv(hw128, t_cap)
    if hw128 >= min_tiles * 128:
        k = max(k, min_tiles)
    tile = _round_up(_cdiv(hw128, k), 128)
    return tile, k, k * tile


def _make_kernel_lmk_sublane(half, y_hi, x_hi):
    """Landmarks on the sublane axis; one batch element per grid step."""
    half_f = float(half)
    eps1 = 1.0 + 1e-6

    def kernel(lmk_ref, rows_ref, cols_ref, out_ref):
        rows_f = rows_ref[...]                      # (1, tile) f32, hoisted grid
        cols_f = cols_ref[...]                      # (1, tile) f32
        lmk = lmk_ref[0]                            # (L_pad, 2) f32
        y_c = jnp.clip(lmk[:, 0:1], half_f, y_hi)   # (L_pad, 1)
        x_c = jnp.clip(lmk[:, 1:2], half_f, x_hi)
        iy = jnp.floor(y_c)                         # == trunc (coords >= 0)
        ix = jnp.floor(x_c)

        dr = rows_f - y_c                           # (L_pad, tile)
        dc = cols_f - x_c
        # rsqrt -> EUP slot (check bundle: should be a single vrsqrt, no VALU
        # Newton fixup; precision slack is fine, values only feed a max).
        val = jax.lax.rsqrt(dr * dr + dc * dc + eps1)
        # Patch window: Chebyshev distance to the integer landmark <= half.
        cheb = jnp.maximum(jnp.abs(rows_f - iy), jnp.abs(cols_f - ix))
        contrib = jnp.where(cheb <= half_f, val, 0.0)
        # Reduce over landmarks across sublanes -> XLU slot (VALU stays free).
        out_ref[0] = jnp.max(contrib, axis=0, keepdims=True)

    return kernel


def _make_kernel_batch_sublane(L, half, y_hi, x_hi):
    """Batch rows on the sublane axis; only used when N >= 8 and L < 8."""
    half_f = float(half)
    eps1 = 1.0 + 1e-6

    def kernel(lmk_ref, rows_ref, cols_ref, out_ref):
        rows_f = rows_ref[...]                      # (1, tile) f32
        cols_f = cols_ref[...]
        lmks = lmk_ref[...]                         # (block_n, 2L) f32
        heat = None
        for l in range(L):                          # L < 8 here -> cheap unroll
            y_c = jnp.clip(lmks[:, 2 * l:2 * l + 1], half_f, y_hi)   # (block_n, 1)
            x_c = jnp.clip(lmks[:, 2 * l + 1:2 * l + 2], half_f, x_hi)
            iy = jnp.floor(y_c)
            ix = jnp.floor(x_c)
            dr = rows_f - y_c                       # (block_n, tile)
            dc = cols_f - x_c
            val = jax.lax.rsqrt(dr * dr + dc * dc + eps1)
            cheb = jnp.maximum(jnp.abs(rows_f - iy), jnp.abs(cols_f - ix))
            contrib = jnp.where(cheb <= half_f, val, 0.0)
            heat = contrib if heat is None else jnp.maximum(heat, contrib)
        out_ref[...] = heat

    return kernel


def heatmap_pallas(landmarks, img_size, patch_size):
    """landmarks: (N, L, 2) float (row, col) -> heatmaps (N, 1, H, W) float32."""
    H, W = int(img_size[0]), int(img_size[1])
    half = patch_size // 2
    N, L, _ = landmarks.shape
    HW = H * W

    # NOTE: the torch module clamps coord i with img_shape[1 - i]: coord 0
    # (row) with W, coord 1 (col) with H.  That quirk is only self-consistent
    # for H == W; it is reproduced faithfully here (surfaced to model owner).
    y_hi = float(W - 1 - half)
    x_hi = float(H - 1 - half)

    lmk = landmarks.astype(jnp.float32)

    compiler_params = pltpu.CompilerParams(
        dimension_semantics=("parallel", "parallel"),
        vmem_limit_bytes=32 << 20)

    use_lmk_sublane = (N < 8) or (L >= 8)

    if use_lmk_sublane:
        # ---- landmarks-on-sublane path -------------------------------------
        L_pad = max(8, _round_up(L, 8))
        if L_pad != L:
            # Pad by replicating landmark 0: duplicates never change the max.
            lmk = jnp.concatenate(
                [lmk, jnp.broadcast_to(lmk[:, :1, :], (N, L_pad - L, 2))], axis=1)

        # Keep >= 2 grid steps so v7x's second TensorCore is not idle; the
        # extra step costs ~0.35 us on v5e/v6e (negligible, kernel is
        # compute-bound).
        min_tiles = 2 if N == 1 else 1
        tile, k, HW_pad = _lane_tiling(HW, L_pad, min_tiles)

        # Hoisted pixel-coordinate grids (no per-step div/mod in the kernel).
        p = jnp.arange(HW_pad, dtype=jnp.int32)
        rows_f = (p // W).astype(jnp.float32).reshape(1, HW_pad)
        cols_f = (p % W).astype(jnp.float32).reshape(1, HW_pad)

        kernel = _make_kernel_lmk_sublane(half, y_hi, x_hi)
        out = pl.pallas_call(
            kernel,
            out_shape=jax.ShapeDtypeStruct((N, 1, HW_pad), jnp.float32),
            grid=(N, k),
            in_specs=[
                pl.BlockSpec((1, L_pad, 2), lambda n, t: (n, 0, 0)),
                pl.BlockSpec((1, tile), lambda n, t: (0, t)),
                pl.BlockSpec((1, tile), lambda n, t: (0, t)),
            ],
            out_specs=pl.BlockSpec((1, 1, tile), lambda n, t: (n, 0, t)),
            compiler_params=compiler_params,
        )(lmk, rows_f, cols_f)
        return out[:, :, :HW].reshape(N, 1, H, W)

    # ---- batch-on-sublane path (N >= 8, L < 8) -----------------------------
    n_pad = _round_up(N, 8)
    block_n = 8
    while block_n * 2 <= 32 and n_pad % (block_n * 2) == 0:
        block_n *= 2
    lmk2 = lmk.reshape(N, 2 * L)
    if n_pad != N:
        lmk2 = jnp.pad(lmk2, ((0, n_pad - N), (0, 0)))

    n_steps = n_pad // block_n
    min_tiles = 2 if n_steps == 1 else 1
    tile, k, HW_pad = _lane_tiling(HW, block_n, min_tiles)

    p = jnp.arange(HW_pad, dtype=jnp.int32)
    rows_f = (p // W).astype(jnp.float32).reshape(1, HW_pad)
    cols_f = (p % W).astype(jnp.float32).reshape(1, HW_pad)

    kernel = _make_kernel_batch_sublane(L, half, y_hi, x_hi)
    out = pl.pallas_call(
        kernel,
        out_shape=jax.ShapeDtypeStruct((n_pad, HW_pad), jnp.float32),
        grid=(n_steps, k),
        in_specs=[
            pl.BlockSpec((block_n, 2 * L), lambda n, t: (n, 0)),
            pl.BlockSpec((1, tile), lambda n, t: (0, t)),
            pl.BlockSpec((1, tile), lambda n, t: (0, t)),
        ],
        out_specs=pl.BlockSpec((block_n, tile), lambda n, t: (n, t)),
        compiler_params=compiler_params,
    )(lmk2, rows_f, cols_f)
    return out[:N, :HW].reshape(N, 1, H, W)


def heatmap_reference_numpy(landmarks, img_size, patch_size):
    """Literal numpy re-implementation of the PyTorch forward (for checking)."""
    H, W = img_size
    half = patch_size // 2
    N, L, _ = landmarks.shape
    offs = np.array(
        list(itertools.product(range(-half, half + 1), range(-half, half + 1))),
        dtype=np.float32)
    out = np.zeros((N, 1, H, W), dtype=np.float32)
    for n in range(N):
        lm = landmarks[n].astype(np.float32).copy()
        lm[:, 0] = np.clip(lm[:, 0], half, W - 1 - half)  # img_shape[1 - 0]
        lm[:, 1] = np.clip(lm[:, 1], half, H - 1 - half)  # img_shape[1 - 1]
        maps = np.zeros((L, H, W), dtype=np.float32)
        for l in range(L):
            int_lmk = lm[l].astype(np.int64)
            locs = offs.astype(np.int64) + int_lmk
            diffs = lm[l] - int_lmk.astype(np.float32)
            osub = offs - diffs
            vals = 1.0 / np.sqrt(1.0 + (osub ** 2).sum(axis=1) + 1e-6)
            maps[l, locs[:, 0], locs[:, 1]] = vals
        out[n, 0] = maps.max(axis=0)
    return out


if __name__ == "__main__":
    img_size = (16, 16)
    patch_size = 3

    key = jax.random.PRNGKey(0)
    k1, k2 = jax.random.split(key)

    # Path A: landmarks-on-sublane (small batch, the shipped configuration).
    N1, L1 = 2, 8
    lmk1 = jax.random.uniform(k1, (N1, L1, 2), dtype=jnp.float32,
                              minval=0.0, maxval=16.0)
    out1 = jax.block_until_ready(heatmap_pallas(lmk1, img_size, patch_size))
    assert out1.shape == (N1, 1, img_size[0], img_size[1])
    ref1 = heatmap_reference_numpy(np.asarray(lmk1), img_size, patch_size)
    np.testing.assert_allclose(np.asarray(out1), ref1, rtol=1e-4, atol=1e-4)

    # Path B: batch-on-sublane (N >= 8, few landmarks).
    N2, L2 = 8, 4
    lmk2 = jax.random.uniform(k2, (N2, L2, 2), dtype=jnp.float32,
                              minval=0.0, maxval=16.0)
    out2 = jax.block_until_ready(heatmap_pallas(lmk2, img_size, patch_size))
    assert out2.shape == (N2, 1, img_size[0], img_size[1])
    ref2 = heatmap_reference_numpy(np.asarray(lmk2), img_size, patch_size)
    np.testing.assert_allclose(np.asarray(out2), ref2, rtol=1e-4, atol=1e-4)

    print("KERNEL_OK")
</pallas_src>

<mosaic_0001>
module attributes {stable_mosaic.version = 11 : i64} {
  func.func @kernel(%arg0: i32, %arg1: i32, %arg2: memref<1x8x2xf32, #tpu.memory_space<vmem>>, %arg3: memref<1x256xf32, #tpu.memory_space<vmem>>, %arg4: memref<1x256xf32, #tpu.memory_space<vmem>>, %arg5: memref<1x1x256xf32, #tpu.memory_space<vmem>>) attributes {dimension_semantics = [#tpu.dimension_semantics<parallel>, #tpu.dimension_semantics<parallel>], iteration_bounds = array<i64: 2, 1>, scalar_prefetch = 0 : i64, scratch_operands = 0 : i64, tpu.core_type = #tpu.core_type<tc>, window_params = [{transform_indices = @transform_0, window_bounds = array<i64: 1, 8, 2>}, {transform_indices = @transform_1, window_bounds = array<i64: 1, 256>}, {transform_indices = @transform_2, window_bounds = array<i64: 1, 256>}, {transform_indices = @transform_3, window_bounds = array<i64: 1, 1, 256>}]} {
    %c0 = arith.constant 0 : index
    %c0_0 = arith.constant 0 : index
    %0 = vector.load %arg3[%c0, %c0_0] : memref<1x256xf32, #tpu.memory_space<vmem>>, vector<1x256xf32>
    %c0_1 = arith.constant 0 : index
    %c0_2 = arith.constant 0 : index
    %1 = vector.load %arg4[%c0_1, %c0_2] : memref<1x256xf32, #tpu.memory_space<vmem>>, vector<1x256xf32>
    %c0_3 = arith.constant 0 : index
    %c0_4 = arith.constant 0 : index
    %c0_5 = arith.constant 0 : index
    %2 = vector.load %arg2[%c0_3, %c0_4, %c0_5] : memref<1x8x2xf32, #tpu.memory_space<vmem>>, vector<1x8x2xf32>
    %3 = vector.shape_cast %2 : vector<1x8x2xf32> to vector<8x2xf32>
    %4 = vector.extract_strided_slice %3 {offsets = [0, 0], sizes = [8, 1], strides = [1, 1]} : vector<8x2xf32> to vector<8x1xf32>
    %cst = arith.constant 1.000000e+00 : f32
    %cst_6 = arith.constant 1.400000e+01 : f32
    %5 = vector.broadcast %cst : f32 to vector<8x1xf32>
    %6 = arith.maximumf %5, %4 : vector<8x1xf32>
    %7 = vector.broadcast %cst_6 : f32 to vector<8x1xf32>
    %8 = arith.minimumf %7, %6 : vector<8x1xf32>
    %9 = vector.extract_strided_slice %3 {offsets = [0, 1], sizes = [8, 1], strides = [1, 1]} : vector<8x2xf32> to vector<8x1xf32>
    %cst_7 = arith.constant 1.000000e+00 : f32
    %cst_8 = arith.constant 1.400000e+01 : f32
    %10 = vector.broadcast %cst_7 : f32 to vector<8x1xf32>
    %11 = arith.maximumf %10, %9 : vector<8x1xf32>
    %12 = vector.broadcast %cst_8 : f32 to vector<8x1xf32>
    %13 = arith.minimumf %12, %11 : vector<8x1xf32>
    %14 = math.floor %8 : vector<8x1xf32>
    %15 = math.floor %13 : vector<8x1xf32>
    %16 = vector.broadcast %0 : vector<1x256xf32> to vector<8x256xf32>
    %17 = vector.broadcast %8 : vector<8x1xf32> to vector<8x256xf32>
    %18 = arith.subf %16, %17 : vector<8x256xf32>
    %19 = vector.broadcast %1 : vector<1x256xf32> to vector<8x256xf32>
    %20 = vector.broadcast %13 : vector<8x1xf32> to vector<8x256xf32>
    %21 = arith.subf %19, %20 : vector<8x256xf32>
    %22 = arith.mulf %18, %18 : vector<8x256xf32>
    %23 = arith.mulf %21, %21 : vector<8x256xf32>
    %24 = arith.addf %22, %23 : vector<8x256xf32>
    %cst_9 = arith.constant 1.00000095 : f32
    %25 = vector.broadcast %cst_9 : f32 to vector<8x256xf32>
    %26 = arith.addf %24, %25 : vector<8x256xf32>
    %27 = math.rsqrt %26 : vector<8x256xf32>
    %28 = vector.broadcast %0 : vector<1x256xf32> to vector<8x256xf32>
    %29 = vector.broadcast %14 : vector<8x1xf32> to vector<8x256xf32>
    %30 = arith.subf %28, %29 : vector<8x256xf32>
    %31 = math.absf %30 : vector<8x256xf32>
    %32 = vector.broadcast %1 : vector<1x256xf32> to vector<8x256xf32>
    %33 = vector.broadcast %15 : vector<8x1xf32> to vector<8x256xf32>
    %34 = arith.subf %32, %33 : vector<8x256xf32>
    %35 = math.absf %34 : vector<8x256xf32>
    %36 = arith.maximumf %31, %35 : vector<8x256xf32>
    %cst_10 = arith.constant 1.000000e+00 : f32
    %37 = vector.broadcast %cst_10 : f32 to vector<8x256xf32>
    %38 = arith.cmpf ole, %36, %37 : vector<8x256xf32>
    %cst_11 = arith.constant 0.000000e+00 : f32
    %39 = vector.broadcast %cst_11 : f32 to vector<8x256xf32>
    %40 = arith.select %38, %27, %39 : vector<8x256xi1>, vector<8x256xf32>
    %cst_12 = arith.constant dense<0xFF800000> : vector<256xf32>
    %41 = vector.multi_reduction <maximumf>, %40, %cst_12 [0] : vector<8x256xf32> to vector<256xf32>
    %42 = vector.shape_cast %41 : vector<256xf32> to vector<1x256xf32>
    %c0_13 = arith.constant 0 : index
    %c0_14 = arith.constant 0 : index
    %c0_15 = arith.constant 0 : index
    %43 = vector.load %arg5[%c0_13, %c0_14, %c0_15] : memref<1x1x256xf32, #tpu.memory_space<vmem>>, vector<1x1x256xf32>
    %44 = vector.shape_cast %43 : vector<1x1x256xf32> to vector<1x256xf32>
    %45 = vector.shape_cast %42 : vector<1x256xf32> to vector<1x1x256xf32>
    tpu.vector_store %arg5[%c0_13, %c0_14, %c0_15], %45 {strides = array<i32>} : memref<1x1x256xf32, #tpu.memory_space<vmem>>, vector<1x1x256xf32>,
    return
  }
  func.func @transform_0(%arg0: i32, %arg1: i32) -> (i32, i32, i32) {
    %c0_i32 = arith.constant 0 : i32
    %c0_i32_0 = arith.constant 0 : i32
    %c0_i32_1 = arith.constant 0 : i32
    return %arg0, %c0_i32, %c0_i32_0 : i32, i32, i32
  }
  func.func @transform_1(%arg0: i32, %arg1: i32) -> (i32, i32) {
    %c0_i32 = arith.constant 0 : i32
    %c0_i32_0 = arith.constant 0 : i32
    return %c0_i32, %arg1 : i32, i32
  }
  func.func @transform_2(%arg0: i32, %arg1: i32) -> (i32, i32) {
    %c0_i32 = arith.constant 0 : i32
    %c0_i32_0 = arith.constant 0 : i32
    return %c0_i32, %arg1 : i32, i32
  }
  func.func @transform_3(%arg0: i32, %arg1: i32) -> (i32, i32, i32) {
    %c0_i32 = arith.constant 0 : i32
    %c0_i32_0 = arith.constant 0 : i32
    return %arg0, %c0_i32, %arg1 : i32, i32, i32
  }
}

</mosaic_0001>

<llo_original>
// kernel: tpu_custom_call.1
$region0: #{tpu_custom_call.1}
  #allocation0 [shape = 'u32[]', space=smem, size = 0x4, offset = 0x4, fixed_abs, tag = 'smem constant byte address 0x4 - core index']
  #allocation1 [shape = 'u32[72,128]{1,0:T(1,128)}', space=vmem, size = 0x9000, scoped, tag = 'internal scratch']
  %s0 = inlined_call_operand.vmem [shape: f32[2,8,2], index: 0, kind: input, shape index: {}]
  %s1 = inlined_call_operand.vmem [shape: f32[1,256], index: 1, kind: input, shape index: {}]
  %s2 = inlined_call_operand.vmem [shape: f32[1,256], index: 2, kind: input, shape index: {}]
  %s3 = inlined_call_operand.hbm [shape: f32[2,1,256], index: 3, kind: output, shape index: {}]
  %s4 = sld [smem:[#allocation0]]
  $region45: #{tpu_custom_call.1} parent=0
    _
  %s6 = ssub.s32 1, %s4
  %s7 = scalar_select 0, %s6, %s4
  $region1: #{tpu_custom_call.1} parent=0
    #allocation2 [shape = 'u8[2048]{0}', space=vmem, size = 0x800, scoped, tag = 'output window, operand 0']
    #allocation3 [shape = 's32[2]{0}', space=sflag, size = 0x8, scoped, tag = 'scoped memory for tpu_custom_call.1']
    %8 = vsyncpa [#allocation3], 0
    %s9 = scalar_lea.sflag [#allocation3], 1
    %10 = vsyncpa %s9, 0
    loop: start=0, step=1, limit=4
    $region2: #{tpu_custom_call.1} parent=1 // loop_pre_header
      _
    $region3: #{tpu_custom_call.1} parent=1 // loop_header
      %s12 = sphi 0, %s16
      %p13 = scmp.ge.s32.totalorder %s12, 4
      %s19 = sphi 0, %s31
      %s20 = sphi 0, %s27
      %s21 = sphi 0, %s19
      %s22 = sphi 0, %s20
      %s23 = sphi 0, %s21
      %s24 = sphi 0, %s22
      %s34 = sphi 0, %s36
      %s37 = sphi 0, %s34
      %s38 = sphi 0, %s37
      %s54 = sphi 0, %s38
      %s60 = sphi 0, %s62
      %s63 = sphi 0, %s60
      %s64 = sphi 0, %s63
      %s80 = sphi 0, %s64
      %s86 = sphi 0, %s88
      %s89 = sphi 0, %s86
      %s90 = sphi 0, %s89
      %s106 = sphi 0, %s90
      %s114 = sphi 0, %s116
      %s117 = sphi 0, %s114
      %s118 = sphi 0, %s117
      %s134 = sphi 0, %s118
    $region4: #{tpu_custom_call.1} parent=1 // loop_header_branch
      %15 = sbr.rel (%p13) target = $region8
    $region5: #{tpu_custom_call.1} parent=1 // loop_body
      %s17 = ssub.s32 %s12, 1
      %s18 = ssub.s32 %s12, 2
      %s25 = sadd.s32 1, %s20
      %p26 = scmp.ge.s32.totalorder %s25, 1
      %s27 = scalar_select %p26, 0, %s25
      %s28 = sadd.s32 1, %s19
      %s29 = scalar_select %p26, %s28, %s19
      %p30 = scmp.ge.s32.totalorder %s29, 2
      %s31 = scalar_select %p30, 0, %s29
      %s32 = ssub.s32 %s19, %s31
      %p33 = scmp.eq.s32.totalorder %s32, 0
      %s35 = sadd.s32 %s34, 1
      %s36 = scalar_select %p33, %s34, %s35
      %p39 = pneg %p33
      %p40 = scmp.eq.s32.totalorder %s12, 1
      %p41 = por %p39, %p40
      %p42 = scmp.ne.s32.totalorder %s34, %s37
      %p43 = scmp.eq.s32.totalorder %s12, 0
      %p44 = por %p42, %p43
      %p45 = scmp.ne.s32.totalorder %s34, %s37
      %p46 = scmp.eq.s32.totalorder %s17, 1
      %p47 = por %p45, %p46
      %p48 = scmp.ne.s32.totalorder %s37, %s38
      %p49 = scmp.eq.s32.totalorder %s17, 0
      %p50 = por %p48, %p49
      %p51 = scmp.ne.s32.totalorder %s37, %s38
      %p52 = scmp.eq.s32.totalorder %s18, 1
      %p53 = por %p51, %p52
      %p55 = scmp.ne.s32.totalorder %s38, %s54
      %p56 = scmp.eq.s32.totalorder %s18, 0
      %p57 = por %p55, %p56
      %s58 = ssub.s32 %s20, %s27
      %p59 = scmp.eq.s32.totalorder %s58, 0
      %s61 = sadd.s32 %s60, 1
      %s62 = scalar_select %p59, %s60, %s61
      %p65 = pneg %p59
      %p66 = scmp.eq.s32.totalorder %s12, 1
      %p67 = por %p65, %p66
      %p68 = scmp.ne.s32.totalorder %s60, %s63
      %p69 = scmp.eq.s32.totalorder %s12, 0
      %p70 = por %p68, %p69
      %p71 = scmp.ne.s32.totalorder %s60, %s63
      %p72 = scmp.eq.s32.totalorder %s17, 1
      %p73 = por %p71, %p72
      %p74 = scmp.ne.s32.totalorder %s63, %s64
      %p75 = scmp.eq.s32.totalorder %s17, 0
      %p76 = por %p74, %p75
      %p77 = scmp.ne.s32.totalorder %s63, %s64
      %p78 = scmp.eq.s32.totalorder %s18, 1
      %p79 = por %p77, %p78
      %p81 = scmp.ne.s32.totalorder %s64, %s80
      %p82 = scmp.eq.s32.totalorder %s18, 0
      %p83 = por %p81, %p82
      %s84 = ssub.s32 %s20, %s27
      %p85 = scmp.eq.s32.totalorder %s84, 0
      %s87 = sadd.s32 %s86, 1
      %s88 = scalar_select %p85, %s86, %s87
      %p91 = pneg %p85
      %p92 = scmp.eq.s32.totalorder %s12, 1
      %p93 = por %p91, %p92
      %p94 = scmp.ne.s32.totalorder %s86, %s89
      %p95 = scmp.eq.s32.totalorder %s12, 0
      %p96 = por %p94, %p95
      %p97 = scmp.ne.s32.totalorder %s86, %s89
      %p98 = scmp.eq.s32.totalorder %s17, 1
      %p99 = por %p97, %p98
      %p100 = scmp.ne.s32.totalorder %s89, %s90
      %p101 = scmp.eq.s32.totalorder %s17, 0
      %p102 = por %p100, %p101
      %p103 = scmp.ne.s32.totalorder %s89, %s90
      %p104 = scmp.eq.s32.totalorder %s18, 1
      %p105 = por %p103, %p104
      %p107 = scmp.ne.s32.totalorder %s90, %s106
      %p108 = scmp.eq.s32.totalorder %s18, 0
      %p109 = por %p107, %p108
      %s110 = ssub.s32 %s19, %s31
      %s111 = ssub.s32 %s20, %s27
      %s112 = sor.u32 %s110, %s111
      %p113 = scmp.eq.s32.totalorder %s112, 0
      %s115 = sadd.s32 %s114, 1
      %s116 = scalar_select %p113, %s114, %s115
      %p119 = pneg %p113
      %p120 = scmp.eq.s32.totalorder %s12, 1
      %p121 = por %p119, %p120
      %p122 = scmp.ne.s32.totalorder %s114, %s117
      %p123 = scmp.eq.s32.totalorder %s12, 0
      %p124 = por %p122, %p123
      %p125 = scmp.ne.s32.totalorder %s114, %s117
      %p126 = scmp.eq.s32.totalorder %s17, 1
      %p127 = por %p125, %p126
      %p128 = scmp.ne.s32.totalorder %s117, %s118
      %p129 = scmp.eq.s32.totalorder %s17, 0
      %p130 = por %p128, %p129
      %p131 = scmp.ne.s32.totalorder %s117, %s118
      %p132 = scmp.eq.s32.totalorder %s18, 1
      %p133 = por %p131, %p132
      %p135 = scmp.ne.s32.totalorder %s118, %s134
      %p136 = scmp.eq.s32.totalorder %s18, 0
      %p137 = por %p135, %p136
      %p138 = scmp.le.s32.totalorder 1, %s12
      %p139 = scmp.lt.s32.totalorder %s12, 3
      %p140 = pnand %p138, %p139
      %p141 = pneg %p140
      // Predicated region
      $region9: #{tpu_custom_call.1} parent=5 // pred_check
        _
      $region10: #{tpu_custom_call.1} parent=5 // pred_check_branch
        %143 = sbr.rel (%p140) target = $region12
      $region11: #{tpu_custom_call.1} parent=5 // pred_region
        %s144 = ssub.s32 %s12, 1
        // Predicated region
        $region13: #{tpu_custom_call.1} parent=11 // pred_check
          %p145 = pneg %p76
        $region14: #{tpu_custom_call.1} parent=11 // pred_check_branch
          %147 = sbr.rel (%p145) target = $region16
        $region15: #{tpu_custom_call.1} parent=11 // pred_region
          %s148 = smul.u32 2, %s22
          %p149 = scmp.lt.s32.totalorder %s148, 1
          %s150 = scalar_select %p149, %s148, 1
          %s151 = scalar_lea.vmem %s1, %s150
          %s152 = smul.u32 2, %s22
        $region16: #{tpu_custom_call.1} parent=11 // pred_fallthru
          _
        // Predicated region
        $region17: #{tpu_custom_call.1} parent=11 // pred_check
          %p153 = pneg %p102
        $region18: #{tpu_custom_call.1} parent=11 // pred_check_branch
          %155 = sbr.rel (%p153) target = $region20
        $region19: #{tpu_custom_call.1} parent=11 // pred_region
          %s156 = smul.u32 2, %s22
          %p157 = scmp.lt.s32.totalorder %s156, 1
          %s158 = scalar_select %p157, %s156, 1
          %s159 = scalar_lea.vmem %s2, %s158
          %s160 = smul.u32 2, %s22
        $region20: #{tpu_custom_call.1} parent=11 // pred_fallthru
          _
      $region12: #{tpu_custom_call.1} parent=5 // pred_fallthru
        _
      %p161 = scmp.lt.s32.totalorder %s12, 2
      // Predicated region
      $region21: #{tpu_custom_call.1} parent=5 // pred_check
        %p162 = pneg %p161
      $region22: #{tpu_custom_call.1} parent=5 // pred_check_branch
        %164 = sbr.rel (%p162) target = $region24
      $region23: #{tpu_custom_call.1} parent=5 // pred_region
        // Predicated region
        $region25: #{tpu_custom_call.1} parent=23 // pred_check
          %p165 = pneg %p44
        $region26: #{tpu_custom_call.1} parent=23 // pred_check_branch
          %167 = sbr.rel (%p165) target = $region28
        $region27: #{tpu_custom_call.1} parent=23 // pred_region
          %p168 = scmp.lt.s32.totalorder %s19, 1
          %s169 = scalar_select %p168, %s19, 1
          %s170 = smul.addr %s169, 8
          %s171 = scalar_lea.vmem %s0, %s170
        $region28: #{tpu_custom_call.1} parent=23 // pred_fallthru
          _
      $region24: #{tpu_custom_call.1} parent=5 // pred_fallthru
        _
      %p172 = scmp.le.s32.totalorder 1, %s12
      %p173 = scmp.lt.s32.totalorder %s12, 3
      %p174 = pnand %p172, %p173
      %p175 = pneg %p174
      // Predicated region
      $region29: #{tpu_custom_call.1} parent=5 // pred_check
        _
      $region30: #{tpu_custom_call.1} parent=5 // pred_check_branch
        %177 = sbr.rel (%p174) target = $region32
      $region31: #{tpu_custom_call.1} parent=5 // pred_region
        %s178 = ssub.s32 %s12, 1
        %p179 = scmp.lt.s32.totalorder %s21, 1
        %s180 = scalar_select %p179, %s21, 1
        %s181 = smul.addr %s180, 8
        %s182 = scalar_lea.vmem %s0, %s181
        %p183 = pneg %p50
        %p184 = pneg %p47
        %s185 = smul.u32 2, %s22
        %p186 = scmp.lt.s32.totalorder %s185, 1
        %s187 = scalar_select %p186, %s185, 1
        %s188 = scalar_lea.vmem %s1, %s187
        %p189 = pneg %p76
        %p190 = pneg %p73
        %s191 = smul.u32 2, %s22
        %p192 = scmp.lt.s32.totalorder %s191, 1
        %s193 = scalar_select %p192, %s191, 1
        %s194 = scalar_lea.vmem %s2, %s193
        %p195 = pneg %p102
        %p196 = pneg %p99
        %p197 = pneg %p130
        %p198 = pneg %p127
        %s199 = sand.u32 %s117, 1
        %s200 = scalar_lea.sflag [#allocation3], %s199
        %s201 = sand.u32 %s117, 1
        %s202 = smul.addr %s201, 2
        %s203 = scalar_lea.vmem [#allocation2], %s202
        %p204 = scmp.lt.s32.totalorder %s21, 1
        %s205 = scalar_select %p204, %s21, 1
        %s206 = smul.addr %s205, 8
        %s207 = scalar_lea.vmem %s0, %s206
        %s208 = smul.u32 2, %s22
        %p209 = scmp.lt.s32.totalorder %s208, 1
        %s210 = scalar_select %p209, %s208, 1
        %s211 = scalar_lea.vmem %s1, %s210
        %s212 = smul.u32 2, %s22
        %s213 = smul.u32 2, %s22
        %p214 = scmp.lt.s32.totalorder %s213, 1
        %s215 = scalar_select %p214, %s213, 1
        %s216 = scalar_lea.vmem %s2, %s215
        %s217 = smul.u32 2, %s22
        %s218 = smul.u32 2, %s22
        %v219 = vld [vmem:[%s211] sm:$0x3]
        %v220 = vld [vmem:[%s216] sm:$0x3]
        %v221 = vld [vmem:[%s207] sm:$0xff]
        %v222 = vmax.f32 %v221, 1.0
        %v223 = vmin.f32 %v222, 14.0
        %v224 = vfloor.f32 %v223
        %v226 = vperm.slane %v219, 0
        %v227 = vperm.slane %v219, 1
        %231 = vset.pattern.permute.xlu0 0
        %232 = vperm.xlu0 %231, %v223
        %v233 = vpop.permute.xlu0 %232
        %v235 = vsub.f32 %v226, %v233
        %v236 = vsub.f32 %v227, %v233
        %v238 = vperm.slane %v220, 0
        %v239 = vperm.slane %v220, 1
        %242 = vset.pattern.permute.xlu0 1
        %243 = vperm.xlu0 %242, %v223
        %v244 = vpop.permute.xlu0 %243
        %v246 = vsub.f32 %v238, %v244
        %v247 = vsub.f32 %v239, %v244
        %v248 = vmul.f32 %v235, %v235
        %v249 = vmul.f32 %v236, %v236
        %v250 = vmul.f32 %v246, %v246
        %v251 = vmul.f32 %v247, %v247
        %v252 = vadd.f32 %v248, %v250
        %v253 = vadd.f32 %v249, %v251
        %v254 = vadd.f32 %v252, 1.000001
        %v255 = vadd.f32 %v253, 1.000001
        %v256 = vrsqrt.pop %v254
        %v257 = vmul.f32 %v256, %v254
        %v258 = vmul.f32 %v257, %v256
        %v259 = vmul.f32 0.5, %v258
        %v260 = vsub.f32 1.5, %v259
        %v261 = vmul.f32 %v256, %v260
        %vm262 = vweird.f32 %v254
        %vm263 = vweird.f32 %v256
        %vm264 = vmor %vm262, %vm263
        %v265 = vsel %vm264, %v256, %v261
        %v266 = vrsqrt.pop %v255
        %v267 = vmul.f32 %v266, %v255
        %v268 = vmul.f32 %v267, %v266
        %v269 = vmul.f32 0.5, %v268
        %v270 = vsub.f32 1.5, %v269
        %v271 = vmul.f32 %v266, %v270
        %vm272 = vweird.f32 %v255
        %vm273 = vweird.f32 %v266
        %vm274 = vmor %vm272, %vm273
        %v275 = vsel %vm274, %v266, %v271
        %277 = vset.pattern.permute.xlu0 0
        %278 = vperm.xlu0 %277, %v224
        %v279 = vpop.permute.xlu0 %278
        %v281 = vsub.f32 %v226, %v279
        %v282 = vsub.f32 %v227, %v279
        %v283 = vand.u32 2147483647, %v281
        %v284 = vand.u32 2147483647, %v282
        %285 = vset.pattern.permute.xlu0 1
        %286 = vperm.xlu0 %285, %v224
        %v287 = vpop.permute.xlu0 %286
        %v289 = vsub.f32 %v238, %v287
        %v290 = vsub.f32 %v239, %v287
        %v291 = vand.u32 2147483647, %v289
        %v292 = vand.u32 2147483647, %v290
        %v293 = vmax.f32 %v283, %v291
        %v294 = vmax.f32 %v284, %v292
        %vm295 = vcmp.le.f32.partialorder %v293, 1.0
        %vm296 = vcmp.le.f32.partialorder %v294, 1.0
        %v297 = vsel %vm295, %v265, 0.0
        %v298 = vsel %vm296, %v275, 0.0
        %v299 = vrot.slane %v297, 4
        %v300 = vmax.f32 %v297, %v299
        %v301 = vrot.slane %v300, 2
        %v302 = vmax.f32 %v300, %v301
        %v303 = vrot.slane %v302, 1
        %v304 = vmax.f32 %v302, %v303
        %v305 = vrot.slane %v298, 4
        %v306 = vmax.f32 %v298, %v305
        %v307 = vrot.slane %v306, 2
        %v308 = vmax.f32 %v306, %v307
        %v309 = vrot.slane %v308, 1
        %v310 = vmax.f32 %v308, %v309
        %v313 = vrot.slane %v310, 7
        %vm314 = vcmask 1040384
        %v315 = vsel %vm314, %v304, %v313
        %v317 = vlaneseq
        %vm318 = vcmp.ge.s32.totalorder %v317, 0
        %vm319 = vcmp.lt.s32.totalorder %v317, 256
        %vm320 = vmand %vm318, %vm319
        %321 = vst.msk [vmem:[%s203] sm:$0x3] %vm320, %v315
        %s322 = sand.u32 %s117, 1
        %s323 = scalar_lea.sflag [#allocation3], %s322
        %s324 = sand.u32 %s117, 1
        %s325 = smul.addr %s324, 2
        %s326 = scalar_lea.vmem [#allocation2], %s325
        // Predicated region
        $region33: #{tpu_custom_call.1} parent=31 // pred_check
          %p327 = pneg %p127
        $region34: #{tpu_custom_call.1} parent=31 // pred_check_branch
          %329 = sbr.rel (%p327) target = $region36
        $region35: #{tpu_custom_call.1} parent=31 // pred_region
          %s330 = smul.u32 2, %s22
          %332 = vsyncadd %s323, 0
          %s333 = smul.addr %s21, 2
          %s334 = sadd.s32 %s330, %s333
          %s335 = scalar_lea.hbm %s3, %s334
          %s337 = sshll.u32 %s326, 4
          %s338 = int_to_ptr.vmem [resolvable:$true] %s337
          %s339 = sshll.u32 %s335, 4
          %s340 = int_to_ptr.hbm [resolvable:$true] %s339
          %342 = dma.vmem_to_hbm [thread:$0]  %s338, 32, %s340, %s323
        $region36: #{tpu_custom_call.1} parent=31 // pred_fallthru
          _
      $region32: #{tpu_custom_call.1} parent=5 // pred_fallthru
        _
      %p343 = scmp.le.s32.totalorder 2, %s12
      // Predicated region
      $region37: #{tpu_custom_call.1} parent=5 // pred_check
        %p344 = pneg %p343
      $region38: #{tpu_custom_call.1} parent=5 // pred_check_branch
        %346 = sbr.rel (%p344) target = $region40
      $region39: #{tpu_custom_call.1} parent=5 // pred_region
        %s347 = ssub.s32 %s12, 2
        // Predicated region
        $region41: #{tpu_custom_call.1} parent=39 // pred_check
          %p348 = pneg %p133
        $region42: #{tpu_custom_call.1} parent=39 // pred_check_branch
          %350 = sbr.rel (%p348) target = $region44
        $region43: #{tpu_custom_call.1} parent=39 // pred_region
          %s351 = sand.u32 %s118, 1
          %s352 = scalar_lea.sflag [#allocation3], %s351
          %s353 = sand.u32 %s118, 1
          %s354 = smul.addr %s353, 2
          %s355 = scalar_lea.vmem [#allocation2], %s354
          %357 = dma.done %s352, 32
        $region44: #{tpu_custom_call.1} parent=39 // pred_fallthru
          _
      $region40: #{tpu_custom_call.1} parent=5 // pred_fallthru
        _
    $region6: #{tpu_custom_call.1} parent=1 // loop_footer
      %s16 = sadd.s32 1, %s12
    $region7: #{tpu_custom_call.1} parent=1 // loop_footer_branch
      %11 = sbr.rel target = $region3
    $region8: #{tpu_custom_call.1} parent=1 // loop_exit
      _
    %358 = vsyncpa [#allocation3], 1
    %s359 = scalar_lea.sflag [#allocation3], 1
    %360 = vsyncpa %s359, 1

</llo_original>
